<compile_context>
chip_gen: v7x
topology: tpu7x:2x2x1
jax: 0.10.0
libtpu: 0.0.40
codegen_flags: <defaults>
</compile_context>

<pallas_src>
import functools

import jax
import jax.numpy as jnp
from jax.experimental import pallas as pl
from jax.experimental.pallas import tpu as pltpu


def _round_up(x, m):
    return ((x + m - 1) // m) * m


def fusion_kernel(x_ref, wp_ref, bp_ref, wat_ref, bat_ref, wf_ref, bf_ref,
                  comb_ref, final_ref, *, hidden_size):
    H = hidden_size
    x = x_ref[...]                                                    # (tB, K_pad)

    # Fused projection: block-diag weight -> [relu(xa@Wa+ba) | relu(xv@Wv+bv)]
    h = jnp.dot(x, wp_ref[...], preferred_element_type=jnp.float32) + bp_ref[...]
    h = jnp.maximum(h, 0.0)                                           # (tB, 2H)

    # Fused attention logits: block-diag -> [logits_audio | logits_visual]
    z = jnp.dot(h, wat_ref[...], preferred_element_type=jnp.float32) + bat_ref[...]

    # Segmented softmax over each H-wide half of the 2H lane axis.
    lane = jax.lax.broadcasted_iota(jnp.int32, z.shape, 1)
    is_v = lane >= H
    neg = jnp.float32(-jnp.inf)
    m_a = jnp.max(jnp.where(is_v, neg, z), axis=-1, keepdims=True)
    m_v = jnp.max(jnp.where(is_v, z, neg), axis=-1, keepdims=True)
    e = jnp.exp(z - jnp.where(is_v, m_v, m_a))
    s_a = jnp.sum(jnp.where(is_v, 0.0, e), axis=-1, keepdims=True)
    s_v = jnp.sum(jnp.where(is_v, e, 0.0), axis=-1, keepdims=True)
    inv_a = pl.reciprocal(s_a, approx=True)                           # EUP slot
    inv_v = pl.reciprocal(s_v, approx=True)
    attn = e * jnp.where(is_v, inv_v, inv_a)

    # combined = [out_audio * attn_audio | out_visual * attn_visual]
    comb = h * attn
    comb_ref[...] = comb

    # final = combined @ Wf + bf, done as VPU mul + lane reduce (no N=1 MXU matmul),
    # stored lane-dense (broadcast over 128 lanes; wrapper slices column 0).
    f = jnp.sum(comb * wf_ref[...], axis=-1, keepdims=True) + bf_ref[0, 0]
    final_ref[...] = jnp.broadcast_to(f, final_ref.shape)


def cross_modal_fusion(x_audio, x_visual, params, *, batch_tile=256):
    B, Ka = x_audio.shape
    Kv = x_visual.shape[1]
    H = params["wa"].shape[1]
    twoH = 2 * H
    assert twoH % 128 == 0, "hidden_size must make 2*H a multiple of 128"

    K_pad = _round_up(Ka + Kv, 128)
    tile_b = min(batch_tile, _round_up(B, 8))
    B_pad = _round_up(B, tile_b)

    # Concatenate + zero-pad inputs to a lane-dense (B_pad, K_pad) slab.
    x_cat = jnp.zeros((B_pad, K_pad), jnp.float32)
    x_cat = x_cat.at[:B, :Ka].set(x_audio.astype(jnp.float32))
    x_cat = x_cat.at[:B, Ka:Ka + Kv].set(x_visual.astype(jnp.float32))

    # Block-diagonal fused weights (built once, outside the kernel).
    w_proj = jnp.zeros((K_pad, twoH), jnp.float32)
    w_proj = w_proj.at[:Ka, :H].set(params["wa"])
    w_proj = w_proj.at[Ka:Ka + Kv, H:].set(params["wv"])
    b_proj = jnp.concatenate([params["ba"], params["bv"]], axis=1)      # (1, 2H)

    w_attn = jnp.zeros((twoH, twoH), jnp.float32)
    w_attn = w_attn.at[:H, :H].set(params["waa"])
    w_attn = w_attn.at[H:, H:].set(params["wav"])
    b_attn = jnp.concatenate([params["baa"], params["bav"]], axis=1)    # (1, 2H)

    wf_row = params["wf"].reshape(1, twoH)                              # (2H,1) -> (1,2H)
    bf = params["bf"].reshape(1, 1)

    kernel = functools.partial(fusion_kernel, hidden_size=H)
    grid = (B_pad // tile_b,)

    comb_pad, final_pad = pl.pallas_call(
        kernel,
        grid=grid,
        in_specs=[
            pl.BlockSpec((tile_b, K_pad), lambda i: (i, 0)),            # x (batch-tiled)
            pl.BlockSpec((K_pad, twoH), lambda i: (0, 0)),              # w_proj (resident)
            pl.BlockSpec((1, twoH), lambda i: (0, 0)),                  # b_proj
            pl.BlockSpec((twoH, twoH), lambda i: (0, 0)),               # w_attn (resident)
            pl.BlockSpec((1, twoH), lambda i: (0, 0)),                  # b_attn
            pl.BlockSpec((1, twoH), lambda i: (0, 0)),                  # wf row
            pl.BlockSpec((1, 1), lambda i: (0, 0),
                         memory_space=pltpu.MemorySpace.SMEM),          # bf scalar
        ],
        out_specs=(
            pl.BlockSpec((tile_b, twoH), lambda i: (i, 0)),             # combined
            pl.BlockSpec((tile_b, 128), lambda i: (i, 0)),              # final (lane-dense)
        ),
        out_shape=(
            jax.ShapeDtypeStruct((B_pad, twoH), jnp.float32),
            jax.ShapeDtypeStruct((B_pad, 128), jnp.float32),
        ),
        compiler_params=pltpu.CompilerParams(
            dimension_semantics=("parallel",),          # v7x: shard batch across 2 TCs
            vmem_limit_bytes=32 * 1024 * 1024),         # fits v7x's 64 MiB with headroom
    )(x_cat, w_proj, b_proj, w_attn, b_attn, wf_row, bf)

    combined = comb_pad[:B]
    final_out = final_pad[:B, :1]
    return final_out, combined


def make_params(key, input_size_audio, input_size_visual, hidden_size):
    """Deterministic PyTorch-style uniform(-1/sqrt(fan_in), 1/sqrt(fan_in)) init."""
    def linear(key, fan_in, fan_out):
        k_w, k_b = jax.random.split(key)
        bound = 1.0 / jnp.sqrt(fan_in)
        # stored as (in, out): transpose of torch's (out, in)
        w = jax.random.uniform(k_w, (fan_in, fan_out), jnp.float32, -bound, bound)
        b = jax.random.uniform(k_b, (1, fan_out), jnp.float32, -bound, bound)
        return w, b

    keys = jax.random.split(key, 5)
    wa, ba = linear(keys[0], input_size_audio, hidden_size)      # fc_audio
    wv, bv = linear(keys[1], input_size_visual, hidden_size)     # fc_visual
    waa, baa = linear(keys[2], hidden_size, hidden_size)         # attn_audio
    wav, bav = linear(keys[3], hidden_size, hidden_size)         # attn_visual
    wf, bf = linear(keys[4], 2 * hidden_size, 1)                 # fc_final
    return dict(wa=wa, ba=ba, wv=wv, bv=bv, waa=waa, baa=baa,
                wav=wav, bav=bav, wf=wf, bf=bf)


def reference_forward(x_audio, x_visual, p):
    out_a = jnp.maximum(x_audio @ p["wa"] + p["ba"], 0.0)
    out_v = jnp.maximum(x_visual @ p["wv"] + p["bv"], 0.0)
    attn_a = jax.nn.softmax(out_a @ p["waa"] + p["baa"], axis=-1)
    attn_v = jax.nn.softmax(out_v @ p["wav"] + p["bav"], axis=-1)
    comb = jnp.concatenate([out_a * attn_a, out_v * attn_v], axis=1)
    final = comb @ p["wf"] + p["bf"]
    return final, comb


if __name__ == "__main__":
    # Audio/visual feature vectors of size 5 each (as in the spec's dataframes);
    # hidden_size=64 (the module's default) so combined is exactly 128 lanes wide.
    B = 8
    input_size_audio = 5
    input_size_visual = 5
    hidden_size = 64

    key = jax.random.PRNGKey(0)
    k_a, k_v, k_p = jax.random.split(key, 3)
    x_audio = jax.random.normal(k_a, (B, input_size_audio), jnp.float32)
    x_visual = jax.random.normal(k_v, (B, input_size_visual), jnp.float32)
    params = make_params(k_p, input_size_audio, input_size_visual, hidden_size)

    final_out, combined = cross_modal_fusion(x_audio, x_visual, params)
    jax.block_until_ready((final_out, combined))

    ref_final, ref_comb = reference_forward(x_audio, x_visual, params)
    assert final_out.shape == (B, 1) and combined.shape == (B, 2 * hidden_size)
    # approx=True reciprocal in the softmax trades a tiny (<1e-3 rel) error for EUP slots.
    assert jnp.allclose(combined, ref_comb, atol=1e-2, rtol=1e-2), \
        float(jnp.max(jnp.abs(combined - ref_comb)))
    assert jnp.allclose(final_out, ref_final, atol=1e-2, rtol=1e-2), \
        float(jnp.max(jnp.abs(final_out - ref_final)))

    print("KERNEL_OK")
</pallas_src>

<mosaic_0001>
module attributes {stable_mosaic.version = 11 : i64} {
  func.func @fusion_kernel(%arg0: i32, %arg1: memref<8x128xf32, #tpu.memory_space<vmem>>, %arg2: memref<128x128xf32, #tpu.memory_space<vmem>>, %arg3: memref<1x128xf32, #tpu.memory_space<vmem>>, %arg4: memref<128x128xf32, #tpu.memory_space<vmem>>, %arg5: memref<1x128xf32, #tpu.memory_space<vmem>>, %arg6: memref<1x128xf32, #tpu.memory_space<vmem>>, %arg7: memref<1x1xf32, #tpu.memory_space<smem>>, %arg8: memref<8x128xf32, #tpu.memory_space<vmem>>, %arg9: memref<8x128xf32, #tpu.memory_space<vmem>>) attributes {dimension_semantics = [#tpu.dimension_semantics<parallel>], iteration_bounds = array<i64: 1>, scalar_prefetch = 0 : i64, scratch_operands = 0 : i64, tpu.core_type = #tpu.core_type<tc>, window_params = [{transform_indices = @transform_0, window_bounds = array<i64: 8, 128>}, {pipeline_mode = #tpu.pipeline_mode<synchronous>, transform_indices = @transform_1, window_bounds = array<i64: 128, 128>}, {pipeline_mode = #tpu.pipeline_mode<synchronous>, transform_indices = @transform_2, window_bounds = array<i64: 1, 128>}, {pipeline_mode = #tpu.pipeline_mode<synchronous>, transform_indices = @transform_3, window_bounds = array<i64: 128, 128>}, {pipeline_mode = #tpu.pipeline_mode<synchronous>, transform_indices = @transform_4, window_bounds = array<i64: 1, 128>}, {pipeline_mode = #tpu.pipeline_mode<synchronous>, transform_indices = @transform_5, window_bounds = array<i64: 1, 128>}, {transform_indices = @transform_6, window_bounds = array<i64: 1, 1>}, {transform_indices = @transform_7, window_bounds = array<i64: 8, 128>}, {transform_indices = @transform_8, window_bounds = array<i64: 8, 128>}]} {
    %c0 = arith.constant 0 : index
    %c0_0 = arith.constant 0 : index
    %0 = vector.load %arg1[%c0, %c0_0] : memref<8x128xf32, #tpu.memory_space<vmem>>, vector<8x128xf32>
    %c0_1 = arith.constant 0 : index
    %c0_2 = arith.constant 0 : index
    %1 = vector.load %arg2[%c0_1, %c0_2] : memref<128x128xf32, #tpu.memory_space<vmem>>, vector<128x128xf32>
    %cst = arith.constant dense<0.000000e+00> : vector<8x128xf32>
    %2 = tpu.matmul %0, %1, %cst {dimension_numbers = #tpu.dot_dimension_numbers<[1], [0], [0], [1], [0, 0, 1, 1], [], []>} : vector<8x128xf32>, vector<128x128xf32>, vector<8x128xf32> -> vector<8x128xf32>
    %c0_3 = arith.constant 0 : index
    %c0_4 = arith.constant 0 : index
    %3 = vector.load %arg3[%c0_3, %c0_4] : memref<1x128xf32, #tpu.memory_space<vmem>>, vector<1x128xf32>
    %4 = vector.broadcast %3 : vector<1x128xf32> to vector<8x128xf32>
    %5 = arith.addf %2, %4 : vector<8x128xf32>
    %cst_5 = arith.constant 0.000000e+00 : f32
    %6 = vector.broadcast %cst_5 : f32 to vector<8x128xf32>
    %7 = arith.maximumf %5, %6 : vector<8x128xf32>
    %c0_6 = arith.constant 0 : index
    %c0_7 = arith.constant 0 : index
    %8 = vector.load %arg4[%c0_6, %c0_7] : memref<128x128xf32, #tpu.memory_space<vmem>>, vector<128x128xf32>
    %cst_8 = arith.constant dense<0.000000e+00> : vector<8x128xf32>
    %9 = tpu.matmul %7, %8, %cst_8 {dimension_numbers = #tpu.dot_dimension_numbers<[1], [0], [0], [1], [0, 0, 1, 1], [], []>} : vector<8x128xf32>, vector<128x128xf32>, vector<8x128xf32> -> vector<8x128xf32>
    %c0_9 = arith.constant 0 : index
    %c0_10 = arith.constant 0 : index
    %10 = vector.load %arg5[%c0_9, %c0_10] : memref<1x128xf32, #tpu.memory_space<vmem>>, vector<1x128xf32>
    %11 = vector.broadcast %10 : vector<1x128xf32> to vector<8x128xf32>
    %12 = arith.addf %9, %11 : vector<8x128xf32>
    %13 = tpu.iota {dimensions = array<i32: 1>} : vector<8x128xi32>
    %c64_i32 = arith.constant 64 : i32
    %14 = vector.broadcast %c64_i32 : i32 to vector<8x128xi32>
    %15 = arith.cmpi sge, %13, %14 : vector<8x128xi32>
    %cst_11 = arith.constant 0xFF800000 : f32
    %16 = vector.broadcast %cst_11 : f32 to vector<8x128xf32>
    %17 = arith.select %15, %16, %12 : vector<8x128xi1>, vector<8x128xf32>
    %cst_12 = arith.constant dense<0xFF800000> : vector<8xf32>
    %18 = vector.multi_reduction <maximumf>, %17, %cst_12 [1] : vector<8x128xf32> to vector<8xf32>
    %19 = vector.shape_cast %18 : vector<8xf32> to vector<8x1xf32>
    %cst_13 = arith.constant 0xFF800000 : f32
    %20 = vector.broadcast %cst_13 : f32 to vector<8x128xf32>
    %21 = arith.select %15, %12, %20 : vector<8x128xi1>, vector<8x128xf32>
    %cst_14 = arith.constant dense<0xFF800000> : vector<8xf32>
    %22 = vector.multi_reduction <maximumf>, %21, %cst_14 [1] : vector<8x128xf32> to vector<8xf32>
    %23 = vector.shape_cast %22 : vector<8xf32> to vector<8x1xf32>
    %24 = vector.shape_cast %23 : vector<8x1xf32> to vector<8x1xf32>
    %25 = vector.broadcast %24 : vector<8x1xf32> to vector<8x128xf32>
    %26 = vector.shape_cast %19 : vector<8x1xf32> to vector<8x1xf32>
    %27 = vector.broadcast %26 : vector<8x1xf32> to vector<8x128xf32>
    %28 = arith.select %15, %25, %27 : vector<8x128xi1>, vector<8x128xf32>
    %29 = arith.subf %12, %28 : vector<8x128xf32>
    %30 = math.exp %29 : vector<8x128xf32>
    %cst_15 = arith.constant 0.000000e+00 : f32
    %31 = vector.broadcast %cst_15 : f32 to vector<8x128xf32>
    %32 = arith.select %15, %31, %30 : vector<8x128xi1>, vector<8x128xf32>
    %cst_16 = arith.constant dense<0.000000e+00> : vector<8xf32>
    %33 = vector.multi_reduction <add>, %32, %cst_16 [1] : vector<8x128xf32> to vector<8xf32>
    %34 = vector.shape_cast %33 : vector<8xf32> to vector<8x1xf32>
    %cst_17 = arith.constant 0.000000e+00 : f32
    %35 = vector.broadcast %cst_17 : f32 to vector<8x128xf32>
    %36 = arith.select %15, %30, %35 : vector<8x128xi1>, vector<8x128xf32>
    %cst_18 = arith.constant dense<0.000000e+00> : vector<8xf32>
    %37 = vector.multi_reduction <add>, %36, %cst_18 [1] : vector<8x128xf32> to vector<8xf32>
    %38 = vector.shape_cast %37 : vector<8xf32> to vector<8x1xf32>
    %39 = tpu.reciprocal %34 {approx = true} : vector<8x1xf32> -> vector<8x1xf32>
    %40 = tpu.reciprocal %38 {approx = true} : vector<8x1xf32> -> vector<8x1xf32>
    %41 = vector.shape_cast %40 : vector<8x1xf32> to vector<8x1xf32>
    %42 = vector.broadcast %41 : vector<8x1xf32> to vector<8x128xf32>
    %43 = vector.shape_cast %39 : vector<8x1xf32> to vector<8x1xf32>
    %44 = vector.broadcast %43 : vector<8x1xf32> to vector<8x128xf32>
    %45 = arith.select %15, %42, %44 : vector<8x128xi1>, vector<8x128xf32>
    %46 = arith.mulf %30, %45 : vector<8x128xf32>
    %47 = arith.mulf %7, %46 : vector<8x128xf32>
    %c0_19 = arith.constant 0 : index
    %c0_20 = arith.constant 0 : index
    %48 = vector.load %arg8[%c0_19, %c0_20] : memref<8x128xf32, #tpu.memory_space<vmem>>, vector<8x128xf32>
    tpu.vector_store %arg8[%c0_19, %c0_20], %47 {strides = array<i32>} : memref<8x128xf32, #tpu.memory_space<vmem>>, vector<8x128xf32>,
    %c0_21 = arith.constant 0 : index
    %c0_22 = arith.constant 0 : index
    %49 = vector.load %arg6[%c0_21, %c0_22] : memref<1x128xf32, #tpu.memory_space<vmem>>, vector<1x128xf32>
    %50 = vector.broadcast %49 : vector<1x128xf32> to vector<8x128xf32>
    %51 = arith.mulf %47, %50 : vector<8x128xf32>
    %cst_23 = arith.constant dense<0.000000e+00> : vector<8xf32>
    %52 = vector.multi_reduction <add>, %51, %cst_23 [1] : vector<8x128xf32> to vector<8xf32>
    %53 = vector.shape_cast %52 : vector<8xf32> to vector<8x1xf32>
    %c0_24 = arith.constant 0 : index
    %c0_25 = arith.constant 0 : index
    %54 = memref.load %arg7[%c0_24, %c0_25] : memref<1x1xf32, #tpu.memory_space<smem>>
    %55 = vector.broadcast %54 : f32 to vector<8x1xf32>
    %56 = arith.addf %53, %55 : vector<8x1xf32>
    %57 = vector.shape_cast %56 : vector<8x1xf32> to vector<8x1xf32>
    %58 = vector.broadcast %57 : vector<8x1xf32> to vector<8x128xf32>
    %c0_26 = arith.constant 0 : index
    %c0_27 = arith.constant 0 : index
    %59 = vector.load %arg9[%c0_26, %c0_27] : memref<8x128xf32, #tpu.memory_space<vmem>>, vector<8x128xf32>
    tpu.vector_store %arg9[%c0_26, %c0_27], %58 {strides = array<i32>} : memref<8x128xf32, #tpu.memory_space<vmem>>, vector<8x128xf32>,
    return
  }
  func.func @transform_0(%arg0: i32) -> (i32, i32) {
    %c0_i32 = arith.constant 0 : i32
    %c0_i32_0 = arith.constant 0 : i32
    return %arg0, %c0_i32 : i32, i32
  }
  func.func @transform_1(%arg0: i32) -> (i32, i32) {
    %c0_i32 = arith.constant 0 : i32
    %c0_i32_0 = arith.constant 0 : i32
    %c0_i32_1 = arith.constant 0 : i32
    return %c0_i32, %c0_i32_0 : i32, i32
  }
  func.func @transform_2(%arg0: i32) -> (i32, i32) {
    %c0_i32 = arith.constant 0 : i32
    %c0_i32_0 = arith.constant 0 : i32
    %c0_i32_1 = arith.constant 0 : i32
    return %c0_i32, %c0_i32_0 : i32, i32
  }
  func.func @transform_3(%arg0: i32) -> (i32, i32) {
    %c0_i32 = arith.constant 0 : i32
    %c0_i32_0 = arith.constant 0 : i32
    %c0_i32_1 = arith.constant 0 : i32
    return %c0_i32, %c0_i32_0 : i32, i32
  }
  func.func @transform_4(%arg0: i32) -> (i32, i32) {
    %c0_i32 = arith.constant 0 : i32
    %c0_i32_0 = arith.constant 0 : i32
    %c0_i32_1 = arith.constant 0 : i32
    return %c0_i32, %c0_i32_0 : i32, i32
  }
  func.func @transform_5(%arg0: i32) -> (i32, i32) {
    %c0_i32 = arith.constant 0 : i32
    %c0_i32_0 = arith.constant 0 : i32
    %c0_i32_1 = arith.constant 0 : i32
    return %c0_i32, %c0_i32_0 : i32, i32
  }
  func.func @transform_6(%arg0: i32) -> (i32, i32) {
    %c0_i32 = arith.constant 0 : i32
    %c0_i32_0 = arith.constant 0 : i32
    %c0_i32_1 = arith.constant 0 : i32
    return %c0_i32, %c0_i32_0 : i32, i32
  }
  func.func @transform_7(%arg0: i32) -> (i32, i32) {
    %c0_i32 = arith.constant 0 : i32
    %c0_i32_0 = arith.constant 0 : i32
    return %arg0, %c0_i32 : i32, i32
  }
  func.func @transform_8(%arg0: i32) -> (i32, i32) {
    %c0_i32 = arith.constant 0 : i32
    %c0_i32_0 = arith.constant 0 : i32
    return %arg0, %c0_i32 : i32, i32
  }
}

</mosaic_0001>

<llo_original>
// kernel: tpu_custom_call.1
$region0: #{tpu_custom_call.1}
  #allocation0 [shape = 'u32[]', space=smem, size = 0x4, offset = 0x4, fixed_abs, tag = 'smem constant byte address 0x4 - core index']
  #allocation1 [shape = 'u32[144,128]{1,0:T(1,128)}', space=vmem, size = 0x12000, scoped, tag = 'internal scratch']
  #allocation2 [shape = 'f32[1,1]{1,0:T(1,128)S(6)}', space=smem, size = 0x200, scoped, tag = 'scoped memory for tpu_custom_call.1']
  %s0 = inlined_call_operand.hbm [shape: f32[8,128], index: 0, kind: input, shape index: {}]
  %s1 = inlined_call_operand.hbm [shape: f32[128,128], index: 1, kind: input, shape index: {}]
  %s2 = inlined_call_operand.vmem [shape: f32[1,128], index: 2, kind: input, shape index: {}]
  %s3 = inlined_call_operand.hbm [shape: f32[128,128], index: 3, kind: input, shape index: {}]
  %s4 = inlined_call_operand.vmem [shape: f32[1,128], index: 4, kind: input, shape index: {}]
  %s5 = inlined_call_operand.vmem [shape: f32[1,128], index: 5, kind: input, shape index: {}]
  %s6 = inlined_call_operand.<no memory space> [shape: f32[1,1], index: 6, kind: input, shape index: {}]
  %s7 = inlined_call_operand.hbm [shape: f32[8,128], index: 7, kind: output, shape index: {0}]
  %s8 = inlined_call_operand.hbm [shape: f32[8,128], index: 8, kind: output, shape index: {1}]
  %9 = xla_tuple %s7, %s8
  %s10 = sld [smem:[#allocation0]]
  $region58: #{tpu_custom_call.1} parent=0
    _
  %s12 = ssub.s32 1, %s10
  %s13 = scalar_select 0, %s12, %s10
  %14 = sst [smem:[#allocation2]] %s6
  $region1: #{tpu_custom_call.1} parent=0
    #allocation3 [shape = 'u8[4096]{0}', space=vmem, size = 0x1000, scoped, tag = 'input window, operand 0, single buffered']
    #allocation4 [shape = 's32[1]{0}', space=sflag, size = 0x4, scoped, tag = 'scoped memory for tpu_custom_call.1']
    #allocation5 [shape = 's32[1]{0}', space=sflag, size = 0x4, scoped, tag = 'scoped memory for tpu_custom_call.1']
    #allocation6 [shape = 'u8[65536]{0}', space=vmem, size = 0x10000, scoped, tag = 'input window, operand 1, single buffered']
    #allocation7 [shape = 's32[1]{0}', space=sflag, size = 0x4, scoped, tag = 'scoped memory for tpu_custom_call.1']
    #allocation8 [shape = 'u8[65536]{0}', space=vmem, size = 0x10000, scoped, tag = 'input window, operand 3, single buffered']
    #allocation9 [shape = 'u8[4096]{0}', space=vmem, size = 0x1000, scoped, tag = 'output window, operand 0, single buffered']
    #allocation10 [shape = 'u8[4096]{0}', space=vmem, size = 0x1000, scoped, tag = 'output window, operand 1, single buffered']
    #allocation11 [shape = 's32[1]{0}', space=sflag, size = 0x4, scoped, tag = 'scoped memory for tpu_custom_call.1']
    %15 = vsyncpa [#allocation4], 0
    %16 = vsyncpa [#allocation7], 0
    %17 = vsyncpa [#allocation5], 0
    %18 = vsyncpa [#allocation11], 0
    // Predicated region
    $region2: #{tpu_custom_call.1} parent=1 // pred_check
      _
    $region3: #{tpu_custom_call.1} parent=1 // pred_check_branch
      %20 = sbr.rel (0) target = $region5
    $region4: #{tpu_custom_call.1} parent=1 // pred_region
      %s22 = ssub.s32 128, 128
      %23 = vsyncadd [#allocation4], %s22
      %s25 = sshll.u32 [#allocation3], 4
      %s26 = int_to_ptr.vmem [resolvable:$true] %s25
      %28 = dma.hbm_to_vmem [thread:$0]  %s0, 128, %s26, [#allocation4]
    $region5: #{tpu_custom_call.1} parent=1 // pred_fallthru
      _
    // Predicated region
    $region6: #{tpu_custom_call.1} parent=1 // pred_check
      _
    $region7: #{tpu_custom_call.1} parent=1 // pred_check_branch
      %30 = sbr.rel (0) target = $region9
    $region8: #{tpu_custom_call.1} parent=1 // pred_region
      %s32 = ssub.s32 2048, 2048
      %33 = vsyncadd [#allocation7], %s32
      %s34 = sshll.u32 [#allocation6], 4
      %s35 = int_to_ptr.vmem [resolvable:$true] %s34
      %40 = dma.hbm_to_vmem [thread:$0]  %s1, 2048, %s35, [#allocation7], 128, 128, 8
    $region9: #{tpu_custom_call.1} parent=1 // pred_fallthru
      _
    // Predicated region
    $region10: #{tpu_custom_call.1} parent=1 // pred_check
      _
    $region11: #{tpu_custom_call.1} parent=1 // pred_check_branch
      %42 = sbr.rel (0) target = $region13
    $region12: #{tpu_custom_call.1} parent=1 // pred_region
      _
    $region13: #{tpu_custom_call.1} parent=1 // pred_fallthru
      _
    // Predicated region
    $region14: #{tpu_custom_call.1} parent=1 // pred_check
      _
    $region15: #{tpu_custom_call.1} parent=1 // pred_check_branch
      %44 = sbr.rel (0) target = $region17
    $region16: #{tpu_custom_call.1} parent=1 // pred_region
      %s46 = ssub.s32 2048, 2048
      %47 = vsyncadd [#allocation7], %s46
      %s48 = sshll.u32 [#allocation8], 4
      %s49 = int_to_ptr.vmem [resolvable:$true] %s48
      %54 = dma.hbm_to_vmem [thread:$0]  %s3, 2048, %s49, [#allocation7], 128, 128, 8
    $region17: #{tpu_custom_call.1} parent=1 // pred_fallthru
      _
    // Predicated region
    $region18: #{tpu_custom_call.1} parent=1 // pred_check
      _
    $region19: #{tpu_custom_call.1} parent=1 // pred_check_branch
      %56 = sbr.rel (0) target = $region21
    $region20: #{tpu_custom_call.1} parent=1 // pred_region
      _
    $region21: #{tpu_custom_call.1} parent=1 // pred_fallthru
      _
    // Predicated region
    $region22: #{tpu_custom_call.1} parent=1 // pred_check
      _
    $region23: #{tpu_custom_call.1} parent=1 // pred_check_branch
      %58 = sbr.rel (0) target = $region25
    $region24: #{tpu_custom_call.1} parent=1 // pred_region
      _
    $region25: #{tpu_custom_call.1} parent=1 // pred_fallthru
      _
    // Predicated region
    $region26: #{tpu_custom_call.1} parent=1 // pred_check
      _
    $region27: #{tpu_custom_call.1} parent=1 // pred_check_branch
      %60 = sbr.rel (0) target = $region29
    $region28: #{tpu_custom_call.1} parent=1 // pred_region
      _
    $region29: #{tpu_custom_call.1} parent=1 // pred_fallthru
      _
    // Predicated region
    $region30: #{tpu_custom_call.1} parent=1 // pred_check
      _
    $region31: #{tpu_custom_call.1} parent=1 // pred_check_branch
      %62 = sbr.rel (0) target = $region33
    $region32: #{tpu_custom_call.1} parent=1 // pred_region
      %63 = dma.done [#allocation4], 128
    $region33: #{tpu_custom_call.1} parent=1 // pred_fallthru
      _
    // Predicated region
    $region34: #{tpu_custom_call.1} parent=1 // pred_check
      _
    $region35: #{tpu_custom_call.1} parent=1 // pred_check_branch
      %65 = sbr.rel (0) target = $region37
    $region36: #{tpu_custom_call.1} parent=1 // pred_region
      %66 = dma.done [#allocation7], 2048
    $region37: #{tpu_custom_call.1} parent=1 // pred_fallthru
      _
    // Predicated region
    $region38: #{tpu_custom_call.1} parent=1 // pred_check
      _
    $region39: #{tpu_custom_call.1} parent=1 // pred_check_branch
      %68 = sbr.rel (0) target = $region41
    $region40: #{tpu_custom_call.1} parent=1 // pred_region
      %69 = dma.done [#allocation7], 2048
    $region41: #{tpu_custom_call.1} parent=1 // pred_fallthru
      _
    %v70 = vld [vmem:[#allocation3] sm:$0xff]
    %v71 = vld [vmem:[#allocation6] sm:$0xff]
    %v72 = vld [vmem:[#allocation6 + $0x8] sm:$0xff]
    %v73 = vld [vmem:[#allocation6 + $0x10] sm:$0xff]
    %v74 = vld [vmem:[#allocation6 + $0x18] sm:$0xff]
    %v75 = vld [vmem:[#allocation6 + $0x20] sm:$0xff]
    %v76 = vld [vmem:[#allocation6 + $0x28] sm:$0xff]
    %v77 = vld [vmem:[#allocation6 + $0x30] sm:$0xff]
    %v78 = vld [vmem:[#allocation6 + $0x38] sm:$0xff]
    %v79 = vld [vmem:[#allocation6 + $0x40] sm:$0xff]
    %v80 = vld [vmem:[#allocation6 + $0x48] sm:$0xff]
    %v81 = vld [vmem:[#allocation6 + $0x50] sm:$0xff]
    %v82 = vld [vmem:[#allocation6 + $0x58] sm:$0xff]
    %v83 = vld [vmem:[#allocation6 + $0x60] sm:$0xff]
    %v84 = vld [vmem:[#allocation6 + $0x68] sm:$0xff]
    %v85 = vld [vmem:[#allocation6 + $0x70] sm:$0xff]
    %v86 = vld [vmem:[#allocation6 + $0x78] sm:$0xff]
    %v87 = vld [vmem:[%s2] sm:$0x1]
    %v89 = vlaneseq
    %v90 = vshrl.u32 %v89, 7
    %v91 = vsub.s32 0, %v90
    %v92 = vrot.slane %v87, %v91
    %94 = vmatprep.subr.mxu0 0.0
    %95 = vmatpush1.msra.mxu0 %v71
    %96 = vmatprep.subr.mxu0 0.0
    %97 = vmatpush1.msra.mxu0 %v72
    %98 = vmatprep.subr.mxu0 0.0
    %99 = vmatpush1.msra.mxu0 %v73
    %100 = vmatprep.subr.mxu0 0.0
    %101 = vmatpush1.msra.mxu0 %v74
    %102 = vmatprep.subr.mxu0 0.0
    %103 = vmatpush1.msra.mxu0 %v75
    %104 = vmatprep.subr.mxu0 0.0
    %105 = vmatpush1.msra.mxu0 %v76
    %106 = vmatprep.subr.mxu0 0.0
    %107 = vmatpush1.msra.mxu0 %v77
    %108 = vmatprep.subr.mxu0 0.0
    %109 = vmatpush1.msra.mxu0 %v78
    %110 = vmatprep.subr.mxu0 0.0
    %111 = vmatpush1.msra.mxu0 %v79
    %112 = vmatprep.subr.mxu0 0.0
    %113 = vmatpush1.msra.mxu0 %v80
    %114 = vmatprep.subr.mxu0 0.0
    %115 = vmatpush1.msra.mxu0 %v81
    %116 = vmatprep.subr.mxu0 0.0
    %117 = vmatpush1.msra.mxu0 %v82
    %118 = vmatprep.subr.mxu0 0.0
    %119 = vmatpush1.msra.mxu0 %v83
    %120 = vmatprep.subr.mxu0 0.0
    %121 = vmatpush1.msra.mxu0 %v84
    %122 = vmatprep.subr.mxu0 0.0
    %123 = vmatpush1.msra.mxu0 %v85
    %124 = vmatprep.subr.mxu0 0.0
    %125 = vmatpush1.msra.mxu0 %v86
    %126 = vmatprep.subr.mxu0 0.0
    %127 = vmatpush1.msra.mxu0 0.0
    %128 = vmatprep.subr.mxu0 0.0
    %129 = vmatpush1.msra.mxu0 0.0
    %130 = vmatprep.subr.mxu0 0.0
    %131 = vmatpush1.msra.mxu0 0.0
    %132 = vmatprep.subr.mxu0 0.0
    %133 = vmatpush1.msra.mxu0 0.0
    %134 = vmatprep.subr.mxu0 0.0
    %135 = vmatpush1.msra.mxu0 0.0
    %136 = vmatprep.subr.mxu0 0.0
    %137 = vmatpush1.msra.mxu0 0.0
    %138 = vmatprep.subr.mxu0 0.0
    %139 = vmatpush1.msra.mxu0 0.0
    %140 = vmatprep.subr.mxu0 0.0
    %141 = vmatpush1.msra.mxu0 0.0
    %142 = vmatprep.subr.mxu0 0.0
    %143 = vmatpush1.msra.mxu0 0.0
    %144 = vmatprep.subr.mxu0 0.0
    %145 = vmatpush1.msra.mxu0 0.0
    %146 = vmatprep.subr.mxu0 0.0
    %147 = vmatpush1.msra.mxu0 0.0
    %148 = vmatprep.subr.mxu0 0.0
    %149 = vmatpush1.msra.mxu0 0.0
    %150 = vmatprep.subr.mxu0 0.0
    %151 = vmatpush1.msra.mxu0 0.0
    %152 = vmatprep.subr.mxu0 0.0
    %153 = vmatpush1.msra.mxu0 0.0
    %154 = vmatprep.subr.mxu0 0.0
    %155 = vmatpush1.msra.mxu0 0.0
    %156 = vmatprep.subr.mxu0 0.0
    %157 = vmatpush1.msra.mxu0 0.0
    %158 = vmatprep.mubr.f32.mxu0 0.0
    %159 = vmatmul.mubr.f32.gmra.mrb[0].mxu0 %v70
    %v160 = vpop.f32.mrb[0].mxu0
    %v161 = vadd.f32 %v92, %v160
    %v162 = vpop.f32.mrb[0].mxu0
    %163 = vdwg.mxu0
    %v164 = vmax.f32 %v161, 0.0
    %v165 = vld [vmem:[#allocation8] sm:$0xff]
    %v166 = vld [vmem:[#allocation8 + $0x8] sm:$0xff]
    %v167 = vld [vmem:[#allocation8 + $0x10] sm:$0xff]
    %v168 = vld [vmem:[#allocation8 + $0x18] sm:$0xff]
    %v169 = vld [vmem:[#allocation8 + $0x20] sm:$0xff]
    %v170 = vld [vmem:[#allocation8 + $0x28] sm:$0xff]
    %v171 = vld [vmem:[#allocation8 + $0x30] sm:$0xff]
    %v172 = vld [vmem:[#allocation8 + $0x38] sm:$0xff]
    %v173 = vld [vmem:[#allocation8 + $0x40] sm:$0xff]
    %v174 = vld [vmem:[#allocation8 + $0x48] sm:$0xff]
    %v175 = vld [vmem:[#allocation8 + $0x50] sm:$0xff]
    %v176 = vld [vmem:[#allocation8 + $0x58] sm:$0xff]
    %v177 = vld [vmem:[#allocation8 + $0x60] sm:$0xff]
    %v178 = vld [vmem:[#allocation8 + $0x68] sm:$0xff]
    %v179 = vld [vmem:[#allocation8 + $0x70] sm:$0xff]
    %v180 = vld [vmem:[#allocation8 + $0x78] sm:$0xff]
    %v181 = vld [vmem:[%s4] sm:$0x1]
    %v183 = vlaneseq
    %v184 = vshrl.u32 %v183, 7
    %v185 = vsub.s32 0, %v184
    %v186 = vrot.slane %v181, %v185
    %188 = vmatprep.subr.mxu0 0.0
    %189 = vmatpush1.msra.mxu0 %v165
    %190 = vmatprep.subr.mxu0 0.0
    %191 = vmatpush1.msra.mxu0 %v166
    %192 = vmatprep.subr.mxu0 0.0
    %193 = vmatpush1.msra.mxu0 %v167
    %194 = vmatprep.subr.mxu0 0.0
    %195 = vmatpush1.msra.mxu0 %v168
    %196 = vmatprep.subr.mxu0 0.0
    %197 = vmatpush1.msra.mxu0 %v169
    %198 = vmatprep.subr.mxu0 0.0
    %199 = vmatpush1.msra.mxu0 %v170
    %200 = vmatprep.subr.mxu0 0.0
    %201 = vmatpush1.msra.mxu0 %v171
    %202 = vmatprep.subr.mxu0 0.0
    %203 = vmatpush1.msra.mxu0 %v172
    %204 = vmatprep.subr.mxu0 0.0
    %205 = vmatpush1.msra.mxu0 %v173
    %206 = vmatprep.subr.mxu0 0.0
    %207 = vmatpush1.msra.mxu0 %v174
    %208 = vmatprep.subr.mxu0 0.0
    %209 = vmatpush1.msra.mxu0 %v175
    %210 = vmatprep.subr.mxu0 0.0
    %211 = vmatpush1.msra.mxu0 %v176
    %212 = vmatprep.subr.mxu0 0.0
    %213 = vmatpush1.msra.mxu0 %v177
    %214 = vmatprep.subr.mxu0 0.0
    %215 = vmatpush1.msra.mxu0 %v178
    %216 = vmatprep.subr.mxu0 0.0
    %217 = vmatpush1.msra.mxu0 %v179
    %218 = vmatprep.subr.mxu0 0.0
    %219 = vmatpush1.msra.mxu0 %v180
    %220 = vmatprep.subr.mxu0 0.0
    %221 = vmatpush1.msra.mxu0 0.0
    %222 = vmatprep.subr.mxu0 0.0
    %223 = vmatpush1.msra.mxu0 0.0
    %224 = vmatprep.subr.mxu0 0.0
    %225 = vmatpush1.msra.mxu0 0.0
    %226 = vmatprep.subr.mxu0 0.0
    %227 = vmatpush1.msra.mxu0 0.0
    %228 = vmatprep.subr.mxu0 0.0
    %229 = vmatpush1.msra.mxu0 0.0
    %230 = vmatprep.subr.mxu0 0.0
    %231 = vmatpush1.msra.mxu0 0.0
    %232 = vmatprep.subr.mxu0 0.0
    %233 = vmatpush1.msra.mxu0 0.0
    %234 = vmatprep.subr.mxu0 0.0
    %235 = vmatpush1.msra.mxu0 0.0
    %236 = vmatprep.subr.mxu0 0.0
    %237 = vmatpush1.msra.mxu0 0.0
    %238 = vmatprep.subr.mxu0 0.0
    %239 = vmatpush1.msra.mxu0 0.0
    %240 = vmatprep.subr.mxu0 0.0
    %241 = vmatpush1.msra.mxu0 0.0
    %242 = vmatprep.subr.mxu0 0.0
    %243 = vmatpush1.msra.mxu0 0.0
    %244 = vmatprep.subr.mxu0 0.0
    %245 = vmatpush1.msra.mxu0 0.0
    %246 = vmatprep.subr.mxu0 0.0
    %247 = vmatpush1.msra.mxu0 0.0
    %248 = vmatprep.subr.mxu0 0.0
    %249 = vmatpush1.msra.mxu0 0.0
    %250 = vmatprep.subr.mxu0 0.0
    %251 = vmatpush1.msra.mxu0 0.0
    %252 = vmatprep.mubr.f32.mxu0 0.0
    %253 = vmatmul.mubr.f32.gmra.mrb[0].mxu0 %v164
    %v254 = vpop.f32.mrb[0].mxu0
    %v255 = vadd.f32 %v186, %v254
    %v256 = vpop.f32.mrb[0].mxu0
    %257 = vdwg.mxu0
    %v258 = vlaneseq
    %v259 = vand.u32 %v258, 127
    %vm260 = vcmp.ge.s32.totalorder %v259, 64
    %v261 = vsel %vm260, -inf, %v255
    %262 = vmax.xlane.f32.xlu0 %v261
    %v263 = vpop.xlane.xlu0 %262
    %v264 = vsel %vm260, %v255, -inf
    %265 = vmax.xlane.f32.xlu0 %v264
    %v266 = vpop.xlane.xlu0 %265
    %v267 = vsel %vm260, %v266, %v263
    %v268 = vsub.f32 %v255, %v267
    %v269 = vmul.f32 %v268, 1.442695
    %v270 = vpow.pop %v269
    %v271 = vsel %vm260, 0.0, %v270
    %272 = vadd.xlane.f32.xlu0 %v271
    %v273 = vpop.xlane.xlu0 %272
    %v274 = vsel %vm260, %v270, 0.0
    %275 = vadd.xlane.f32.xlu0 %v274
    %v276 = vpop.xlane.xlu0 %275
    %v277 = vrcp.pop %v273
    %v278 = vrcp.pop %v276
    %v279 = vsel %vm260, %v278, %v277
    %v280 = vmul.f32 %v270, %v279
    %v281 = vmul.f32 %v164, %v280
    %282 = vst [vmem:[#allocation9] sm:$0xff] %v281
    %v283 = vld [vmem:[%s5] sm:$0x1]
    %v285 = vlaneseq
    %v286 = vshrl.u32 %v285, 7
    %v287 = vsub.s32 0, %v286
    %v288 = vrot.slane %v283, %v287
    %v290 = vmul.f32 %v281, %v288
    %291 = vadd.xlane.f32.xlu0 %v290
    %v292 = vpop.xlane.xlu0 %291
    %s293 = sld [smem:[#allocation2]]
    %v294 = vstv %s293
    %v295 = vadd.f32 %v292, %v294
    %296 = vst [vmem:[#allocation10] sm:$0xff] %v295
    // Predicated region
    $region42: #{tpu_custom_call.1} parent=1 // pred_check
      _
    $region43: #{tpu_custom_call.1} parent=1 // pred_check_branch
      %298 = sbr.rel (0) target = $region45
    $region44: #{tpu_custom_call.1} parent=1 // pred_region
      %s300 = ssub.s32 128, 128
      %301 = vsyncadd [#allocation5], %s300
      %s303 = sshll.u32 [#allocation9], 4
      %s304 = int_to_ptr.vmem [resolvable:$true] %s303
      %306 = dma.vmem_to_hbm [thread:$0]  %s304, 128, %s7, [#allocation5]
    $region45: #{tpu_custom_call.1} parent=1 // pred_fallthru
      _
    // Predicated region
    $region46: #{tpu_custom_call.1} parent=1 // pred_check
      _
    $region47: #{tpu_custom_call.1} parent=1 // pred_check_branch
      %308 = sbr.rel (0) target = $region49
    $region48: #{tpu_custom_call.1} parent=1 // pred_region
      %s310 = ssub.s32 128, 128
      %311 = vsyncadd [#allocation11], %s310
      %s313 = sshll.u32 [#allocation10], 4
      %s314 = int_to_ptr.vmem [resolvable:$true] %s313
      %316 = dma.vmem_to_hbm [thread:$0]  %s314, 128, %s8, [#allocation11]
    $region49: #{tpu_custom_call.1} parent=1 // pred_fallthru
      _
    // Predicated region
    $region50: #{tpu_custom_call.1} parent=1 // pred_check
      _
    $region51: #{tpu_custom_call.1} parent=1 // pred_check_branch
      %318 = sbr.rel (0) target = $region53
    $region52: #{tpu_custom_call.1} parent=1 // pred_region
      %319 = dma.done [#allocation5], 128
    $region53: #{tpu_custom_call.1} parent=1 // pred_fallthru
      _
    // Predicated region
    $region54: #{tpu_custom_call.1} parent=1 // pred_check
      _
    $region55: #{tpu_custom_call.1} parent=1 // pred_check_branch
      %321 = sbr.rel (0) target = $region57
    $region56: #{tpu_custom_call.1} parent=1 // pred_region
      %322 = dma.done [#allocation11], 128
    $region57: #{tpu_custom_call.1} parent=1 // pred_fallthru
      _
    %323 = vsyncpa [#allocation4], 1
    %324 = vsyncpa [#allocation7], 1
    %325 = vsyncpa [#allocation5], 1
    %326 = vsyncpa [#allocation11], 1

</llo_original>
